<compile_context>
chip_gen: v5e
topology: v5e:2x2
jax: 0.10.0
libtpu: 0.0.40
codegen_flags: <defaults>
</compile_context>

<pallas_src>
import functools

import jax
import jax.numpy as jnp
import numpy as np
from jax.experimental import pallas as pl
from jax.experimental.pallas import tpu as pltpu

GN_EPS = 1e-10   # GroupBatchnorm2d eps (added to std)
BN_EPS = 1e-5    # nn.BatchNorm2d default eps


def _sigmoid(x):
    # 1/(1+exp(-x)) == 0.5*tanh(x/2)+0.5 : tanh runs on the EUP, no divides.
    return 0.5 * jnp.tanh(0.5 * x) + 0.5


def _dfwe_kernel(patches_ref, wconv_ref, cols_ref, w1_ref, w2_ref, out_ref,
                 *, B, C, G, HW):
    cpg = C // G
    half = C // 2
    n_grp = cpg * HW

    # -------- packed per-channel columns (C, 10) --------
    cols = cols_ref[...]
    b_conv = cols[:, 0:1]
    gn_gamma = cols[:, 1:2]
    gn_beta = cols[:, 2:3]
    w_gamma = cols[:, 3:4]
    info = cols[:, 4:5]
    ninfo_swap = cols[:, 5:6]
    bn_gamma = cols[:, 6:7]
    bn_beta = cols[:, 7:8]
    b1 = cols[:, 8:9]
    b2 = cols[:, 9:10]

    wconv = wconv_ref[...]                                  # (C, 9C)

    def group_stat(col):
        # Replace each channel entry of a (C,1) column by its group sum.
        # Operates on the tiny column only (never reshapes the full slab).
        if cpg == 1:
            return col
        g = jnp.sum(col.reshape(G, cpg), axis=1, keepdims=True)   # (G,1)
        return jnp.broadcast_to(g, (G, cpg)).reshape(C, 1)

    # ---- phase A (per batch): conv1 + GroupBatchnorm2d + MSFI ----
    m_list = []
    msum = jnp.zeros((C, 1), jnp.float32)
    for b in range(B):
        # ReflectionPad2d(1) + 3x3 conv == one (C,9C)x(9C,HW) im2col matmul
        # with the raw shared weight (no block-diagonal / kron).
        y = jnp.dot(wconv, patches_ref[b],
                    preferred_element_type=jnp.float32) + b_conv     # (C,HW)

        # GroupBatchnorm2d: per-(batch, group) mean / unbiased std.
        s = group_stat(jnp.sum(y, axis=1, keepdims=True))            # (C,1)
        mean = s * (1.0 / n_grp)
        d = y - mean
        ss = group_stat(jnp.sum(d * d, axis=1, keepdims=True))
        std = jnp.sqrt(ss * (1.0 / (n_grp - 1)))                     # unbiased
        inv = pl.reciprocal(std + GN_EPS, approx=False)
        gn = d * (inv * gn_gamma) + gn_beta                          # (C,HW)

        # MSFI: softmax(gamma) gating + channel-half reconstruct, fused
        # half-wise on sublane-aligned row slices (no t_swap temporary).
        t = _sigmoid(gn * w_gamma) * y                               # (C,HW)
        t_top, t_bot = t[:half, :], t[half:, :]
        m = jnp.concatenate(
            [info[:half] * t_top + ninfo_swap[:half] * t_bot,
             info[half:] * t_bot + ninfo_swap[half:] * t_top],
            axis=0)                                                  # (C,HW)
        msum = msum + jnp.sum(m, axis=1, keepdims=True)
        m_list.append(m)

    # ---- BatchNorm2d (training-mode batch statistics over N,H,W) ----
    bmean = msum * (1.0 / (B * HW))                                  # (C,1)
    bd_list = []
    bssq = jnp.zeros((C, 1), jnp.float32)
    for b in range(B):
        bd = m_list[b] - bmean
        bssq = bssq + jnp.sum(bd * bd, axis=1, keepdims=True)
        bd_list.append(bd)
    scale = jax.lax.rsqrt(bssq * (1.0 / (B * HW)) + BN_EPS) * bn_gamma

    # ---- BN affine + ReLU, then GAP to (C,1) per batch ----
    out2_list, pooled_cols = [], []
    for b in range(B):
        out2 = jnp.maximum(bd_list[b] * scale + bn_beta, 0.0)        # (C,HW)
        out2_list.append(out2)
        pooled_cols.append(jnp.sum(out2, axis=1, keepdims=True) * (1.0 / HW))

    # ---- global path on pooled (C,B) columns only ----
    pooled = jnp.concatenate(pooled_cols, axis=1)                    # (C,B)
    h1 = jnp.maximum(jnp.dot(w1_ref[...], pooled,
                             preferred_element_type=jnp.float32) + b1, 0.0)
    att = _sigmoid(jnp.dot(w2_ref[...], h1,
                           preferred_element_type=jnp.float32) + b2)  # (C,B)

    # ---- out + out * attention (broadcast the tiny column only here) ----
    for b in range(B):
        out_ref[b] = out2_list[b] * (1.0 + att[:, b:b + 1])


def prepare_params(params, gate_threshold=0.5):
    """One-time (hoisted) constant preparation: conv-weight flatten,
    softmax(gamma), info mask and its swapped complement, packed columns."""
    C = params['w_conv'].shape[0]
    # (Cout, Cin, 3, 3) -> (Cout, 9*Cin) with (tap, ci) column order.
    wconv = jnp.transpose(jnp.asarray(params['w_conv'], jnp.float32),
                          (0, 2, 3, 1)).reshape(C, 9 * C)
    gn_gamma = jnp.asarray(params['gn_gamma'], jnp.float32).reshape(C)
    w_gamma = jax.nn.softmax(gn_gamma)
    info = (w_gamma > gate_threshold).astype(jnp.float32)
    ninfo_swap = 1.0 - jnp.roll(info, -(C // 2))     # 1 - info[(c + C/2) % C]

    def vec(name):
        return jnp.asarray(params[name], jnp.float32).reshape(C)

    cols = jnp.stack([vec('b_conv'), gn_gamma, vec('gn_beta'), w_gamma,
                      info, ninfo_swap, vec('bn_gamma'), vec('bn_beta'),
                      vec('b1'), vec('b2')], axis=1)                # (C, 10)
    return {'wconv': wconv, 'cols': cols,
            'w1': jnp.asarray(params['w1'], jnp.float32),
            'w2': jnp.asarray(params['w2'], jnp.float32)}


@functools.partial(jax.jit, static_argnames=('group_num',))
def dfwe_forward(x_nchw, prep, group_num=16):
    B, C, H, W = x_nchw.shape
    assert C >= group_num and C % group_num == 0 and C % 2 == 0
    HW = H * W
    x = x_nchw.astype(jnp.float32)

    # reflection pad + im2col: (B, 9*C, H*W), rows (tap, channel)-major.
    xpad = jnp.pad(x, ((0, 0), (0, 0), (1, 1), (1, 1)), mode='reflect')
    taps = [xpad[:, :, dh:dh + H, dw:dw + W].reshape(B, C, HW)
            for dh in range(3) for dw in range(3)]
    patches = jnp.concatenate(taps, axis=1)                          # (B,9C,HW)

    kernel = functools.partial(_dfwe_kernel, B=B, C=C, G=group_num, HW=HW)
    vmem = pl.BlockSpec(memory_space=pltpu.MemorySpace.VMEM)
    out = pl.pallas_call(
        kernel,
        out_shape=jax.ShapeDtypeStruct((B, C, HW), jnp.float32),
        in_specs=[vmem] * 5,
        out_specs=vmem,
    )(patches, prep['wconv'], prep['cols'], prep['w1'], prep['w2'])
    return out.reshape(B, C, H, W)                                   # NCHW


def ref_forward(x, p, group_num=16, gate_threshold=0.5):
    """Pure-JAX reference mirroring the PyTorch forward (NCHW)."""
    B, C, H, W = x.shape
    xp = jnp.pad(x, ((0, 0), (0, 0), (1, 1), (1, 1)), mode='reflect')
    y = jax.lax.conv_general_dilated(
        xp, p['w_conv'], (1, 1), 'VALID',
        dimension_numbers=('NCHW', 'OIHW', 'NCHW')) \
        + p['b_conv'][None, :, None, None]
    # GroupBatchnorm2d
    yv = y.reshape(B, group_num, -1)
    mean = yv.mean(axis=2, keepdims=True)
    std = jnp.sqrt(jnp.sum((yv - mean) ** 2, axis=2, keepdims=True)
                   / (yv.shape[2] - 1))
    gn = ((yv - mean) / (std + GN_EPS)).reshape(B, C, H, W)
    gn = gn * p['gn_gamma'][None, :, None, None] + p['gn_beta'][None, :, None, None]
    # MSFI
    wg = jax.nn.softmax(p['gn_gamma'])[None, :, None, None]
    rw = jax.nn.sigmoid(gn * wg)
    info = (wg > gate_threshold).astype(jnp.float32)
    x1 = info * rw * y
    x2 = (1.0 - info) * rw * y
    h = C // 2
    m = jnp.concatenate([x1[:, :h] + x2[:, h:], x1[:, h:] + x2[:, :h]], axis=1)
    # BatchNorm2d (training-mode batch stats) + ReLU
    bm = m.mean(axis=(0, 2, 3), keepdims=True)
    bv = ((m - bm) ** 2).mean(axis=(0, 2, 3), keepdims=True)
    bn = (m - bm) / jnp.sqrt(bv + BN_EPS)
    bn = bn * p['bn_gamma'][None, :, None, None] + p['bn_beta'][None, :, None, None]
    out = jnp.maximum(bn, 0.0)
    # global path
    pooled = out.mean(axis=(2, 3))
    h1 = jnp.maximum(pooled @ p['w1'].T + p['b1'], 0.0)
    att = jax.nn.sigmoid(h1 @ p['w2'].T + p['b2'])
    return out + out * att[:, :, None, None]


if __name__ == "__main__":
    key = jax.random.PRNGKey(0)
    B, C, H, W = 2, 16, 16, 16          # C must be >= group_num (16)
    ks = jax.random.split(key, 8)
    x = jax.random.normal(ks[0], (B, C, H, W), jnp.float32)

    params = {
        'w_conv': jax.random.normal(ks[1], (C, C, 3, 3), jnp.float32) * 0.1,
        'b_conv': jax.random.normal(ks[2], (C,), jnp.float32) * 0.1,
        'gn_gamma': jax.random.normal(ks[3], (C,), jnp.float32),   # randn init
        'gn_beta': jnp.zeros((C,), jnp.float32),
        'bn_gamma': jnp.ones((C,), jnp.float32),                   # BN defaults
        'bn_beta': jnp.zeros((C,), jnp.float32),
        'w1': jax.random.normal(ks[4], (C, C), jnp.float32) * 0.1,
        'b1': jax.random.normal(ks[5], (C,), jnp.float32) * 0.1,
        'w2': jax.random.normal(ks[6], (C, C), jnp.float32) * 0.1,
        'b2': jax.random.normal(ks[7], (C,), jnp.float32) * 0.1,
    }

    prep = jax.tree_util.tree_map(jax.block_until_ready, prepare_params(params))

    out = dfwe_forward(x, prep)
    out = jax.block_until_ready(out)

    ref = jax.block_until_ready(ref_forward(x, params))
    np.testing.assert_allclose(np.asarray(out), np.asarray(ref),
                               rtol=2e-3, atol=2e-3)
    print("KERNEL_OK")
</pallas_src>

<mosaic_0001>
module attributes {stable_mosaic.version = 11 : i64} {
  func.func @_dfwe_kernel(%arg0: memref<2x144x256xf32, #tpu.memory_space<vmem>>, %arg1: memref<16x144xf32, #tpu.memory_space<vmem>>, %arg2: memref<16x10xf32, #tpu.memory_space<vmem>>, %arg3: memref<16x16xf32, #tpu.memory_space<vmem>>, %arg4: memref<16x16xf32, #tpu.memory_space<vmem>>, %arg5: memref<2x16x256xf32, #tpu.memory_space<vmem>>) attributes {dimension_semantics = [], scalar_prefetch = 0 : i64, scratch_operands = 0 : i64, tpu.core_type = #tpu.core_type<tc>} {
    %c0 = arith.constant 0 : index
    %c0_0 = arith.constant 0 : index
    %0 = vector.load %arg2[%c0, %c0_0] : memref<16x10xf32, #tpu.memory_space<vmem>>, vector<16x10xf32>
    %1 = vector.extract_strided_slice %0 {offsets = [0, 0], sizes = [16, 1], strides = [1, 1]} : vector<16x10xf32> to vector<16x1xf32>
    %2 = vector.extract_strided_slice %0 {offsets = [0, 1], sizes = [16, 1], strides = [1, 1]} : vector<16x10xf32> to vector<16x1xf32>
    %3 = vector.extract_strided_slice %0 {offsets = [0, 2], sizes = [16, 1], strides = [1, 1]} : vector<16x10xf32> to vector<16x1xf32>
    %4 = vector.extract_strided_slice %0 {offsets = [0, 3], sizes = [16, 1], strides = [1, 1]} : vector<16x10xf32> to vector<16x1xf32>
    %5 = vector.extract_strided_slice %0 {offsets = [0, 4], sizes = [16, 1], strides = [1, 1]} : vector<16x10xf32> to vector<16x1xf32>
    %6 = vector.extract_strided_slice %0 {offsets = [0, 5], sizes = [16, 1], strides = [1, 1]} : vector<16x10xf32> to vector<16x1xf32>
    %7 = vector.extract_strided_slice %0 {offsets = [0, 6], sizes = [16, 1], strides = [1, 1]} : vector<16x10xf32> to vector<16x1xf32>
    %8 = vector.extract_strided_slice %0 {offsets = [0, 7], sizes = [16, 1], strides = [1, 1]} : vector<16x10xf32> to vector<16x1xf32>
    %9 = vector.extract_strided_slice %0 {offsets = [0, 8], sizes = [16, 1], strides = [1, 1]} : vector<16x10xf32> to vector<16x1xf32>
    %10 = vector.extract_strided_slice %0 {offsets = [0, 9], sizes = [16, 1], strides = [1, 1]} : vector<16x10xf32> to vector<16x1xf32>
    %c0_1 = arith.constant 0 : index
    %c0_2 = arith.constant 0 : index
    %11 = vector.load %arg1[%c0_1, %c0_2] : memref<16x144xf32, #tpu.memory_space<vmem>>, vector<16x144xf32>
    %cst = arith.constant 0.000000e+00 : f32
    %12 = vector.broadcast %cst : f32 to vector<16x1xf32>
    %c0_3 = arith.constant 0 : index
    %c0_4 = arith.constant 0 : index
    %c0_5 = arith.constant 0 : index
    %13 = vector.load %arg0[%c0_3, %c0_4, %c0_5] : memref<2x144x256xf32, #tpu.memory_space<vmem>>, vector<1x144x256xf32>
    %14 = vector.shape_cast %13 : vector<1x144x256xf32> to vector<144x256xf32>
    %cst_6 = arith.constant dense<0.000000e+00> : vector<16x256xf32>
    %15 = tpu.matmul %11, %14, %cst_6 {dimension_numbers = #tpu.dot_dimension_numbers<[1], [0], [0], [1], [0, 0, 1, 1], [], []>} : vector<16x144xf32>, vector<144x256xf32>, vector<16x256xf32> -> vector<16x256xf32>
    %16 = vector.broadcast %1 : vector<16x1xf32> to vector<16x256xf32>
    %17 = arith.addf %15, %16 : vector<16x256xf32>
    %cst_7 = arith.constant dense<0.000000e+00> : vector<16xf32>
    %18 = vector.multi_reduction <add>, %17, %cst_7 [1] : vector<16x256xf32> to vector<16xf32>
    %19 = vector.shape_cast %18 : vector<16xf32> to vector<16x1xf32>
    %cst_8 = arith.constant 3.906250e-03 : f32
    %20 = vector.broadcast %cst_8 : f32 to vector<16x1xf32>
    %21 = arith.mulf %19, %20 : vector<16x1xf32>
    %22 = vector.broadcast %21 : vector<16x1xf32> to vector<16x256xf32>
    %23 = arith.subf %17, %22 : vector<16x256xf32>
    %24 = arith.mulf %23, %23 : vector<16x256xf32>
    %cst_9 = arith.constant dense<0.000000e+00> : vector<16xf32>
    %25 = vector.multi_reduction <add>, %24, %cst_9 [1] : vector<16x256xf32> to vector<16xf32>
    %26 = vector.shape_cast %25 : vector<16xf32> to vector<16x1xf32>
    %cst_10 = arith.constant 0.00392156886 : f32
    %27 = vector.broadcast %cst_10 : f32 to vector<16x1xf32>
    %28 = arith.mulf %26, %27 : vector<16x1xf32>
    %29 = math.sqrt %28 : vector<16x1xf32>
    %cst_11 = arith.constant 1.000000e-10 : f32
    %30 = vector.broadcast %cst_11 : f32 to vector<16x1xf32>
    %31 = arith.addf %29, %30 : vector<16x1xf32>
    %32 = tpu.reciprocal %31 : vector<16x1xf32> -> vector<16x1xf32>
    %33 = arith.mulf %32, %2 : vector<16x1xf32>
    %34 = vector.broadcast %33 : vector<16x1xf32> to vector<16x256xf32>
    %35 = arith.mulf %23, %34 : vector<16x256xf32>
    %36 = vector.broadcast %3 : vector<16x1xf32> to vector<16x256xf32>
    %37 = arith.addf %35, %36 : vector<16x256xf32>
    %38 = vector.broadcast %4 : vector<16x1xf32> to vector<16x256xf32>
    %39 = arith.mulf %37, %38 : vector<16x256xf32>
    %cst_12 = arith.constant 5.000000e-01 : f32
    %40 = vector.broadcast %cst_12 : f32 to vector<16x256xf32>
    %41 = arith.mulf %40, %39 : vector<16x256xf32>
    %42 = math.tanh %41 : vector<16x256xf32>
    %cst_13 = arith.constant 5.000000e-01 : f32
    %43 = vector.broadcast %cst_13 : f32 to vector<16x256xf32>
    %44 = arith.mulf %43, %42 : vector<16x256xf32>
    %cst_14 = arith.constant 5.000000e-01 : f32
    %45 = vector.broadcast %cst_14 : f32 to vector<16x256xf32>
    %46 = arith.addf %44, %45 : vector<16x256xf32>
    %47 = arith.mulf %46, %17 : vector<16x256xf32>
    %48 = vector.extract_strided_slice %47 {offsets = [0, 0], sizes = [8, 256], strides = [1, 1]} : vector<16x256xf32> to vector<8x256xf32>
    %49 = vector.extract_strided_slice %47 {offsets = [8, 0], sizes = [8, 256], strides = [1, 1]} : vector<16x256xf32> to vector<8x256xf32>
    %50 = vector.extract_strided_slice %5 {offsets = [0, 0], sizes = [8, 1], strides = [1, 1]} : vector<16x1xf32> to vector<8x1xf32>
    %51 = vector.broadcast %50 : vector<8x1xf32> to vector<8x256xf32>
    %52 = arith.mulf %51, %48 : vector<8x256xf32>
    %53 = vector.extract_strided_slice %6 {offsets = [0, 0], sizes = [8, 1], strides = [1, 1]} : vector<16x1xf32> to vector<8x1xf32>
    %54 = vector.broadcast %53 : vector<8x1xf32> to vector<8x256xf32>
    %55 = arith.mulf %54, %49 : vector<8x256xf32>
    %56 = arith.addf %52, %55 : vector<8x256xf32>
    %57 = vector.extract_strided_slice %5 {offsets = [8, 0], sizes = [8, 1], strides = [1, 1]} : vector<16x1xf32> to vector<8x1xf32>
    %58 = vector.broadcast %57 : vector<8x1xf32> to vector<8x256xf32>
    %59 = arith.mulf %58, %49 : vector<8x256xf32>
    %60 = vector.extract_strided_slice %6 {offsets = [8, 0], sizes = [8, 1], strides = [1, 1]} : vector<16x1xf32> to vector<8x1xf32>
    %61 = vector.broadcast %60 : vector<8x1xf32> to vector<8x256xf32>
    %62 = arith.mulf %61, %48 : vector<8x256xf32>
    %63 = arith.addf %59, %62 : vector<8x256xf32>
    %64 = tpu.concatenate %56, %63 in 0 : vector<8x256xf32>, vector<8x256xf32> -> vector<16x256xf32>
    %cst_15 = arith.constant dense<0.000000e+00> : vector<16xf32>
    %65 = vector.multi_reduction <add>, %64, %cst_15 [1] : vector<16x256xf32> to vector<16xf32>
    %66 = vector.shape_cast %65 : vector<16xf32> to vector<16x1xf32>
    %67 = arith.addf %12, %66 : vector<16x1xf32>
    %c1 = arith.constant 1 : index
    %c0_16 = arith.constant 0 : index
    %c0_17 = arith.constant 0 : index
    %68 = vector.load %arg0[%c1, %c0_16, %c0_17] : memref<2x144x256xf32, #tpu.memory_space<vmem>>, vector<1x144x256xf32>
    %69 = vector.shape_cast %68 : vector<1x144x256xf32> to vector<144x256xf32>
    %cst_18 = arith.constant dense<0.000000e+00> : vector<16x256xf32>
    %70 = tpu.matmul %11, %69, %cst_18 {dimension_numbers = #tpu.dot_dimension_numbers<[1], [0], [0], [1], [0, 0, 1, 1], [], []>} : vector<16x144xf32>, vector<144x256xf32>, vector<16x256xf32> -> vector<16x256xf32>
    %71 = vector.broadcast %1 : vector<16x1xf32> to vector<16x256xf32>
    %72 = arith.addf %70, %71 : vector<16x256xf32>
    %cst_19 = arith.constant dense<0.000000e+00> : vector<16xf32>
    %73 = vector.multi_reduction <add>, %72, %cst_19 [1] : vector<16x256xf32> to vector<16xf32>
    %74 = vector.shape_cast %73 : vector<16xf32> to vector<16x1xf32>
    %cst_20 = arith.constant 3.906250e-03 : f32
    %75 = vector.broadcast %cst_20 : f32 to vector<16x1xf32>
    %76 = arith.mulf %74, %75 : vector<16x1xf32>
    %77 = vector.broadcast %76 : vector<16x1xf32> to vector<16x256xf32>
    %78 = arith.subf %72, %77 : vector<16x256xf32>
    %79 = arith.mulf %78, %78 : vector<16x256xf32>
    %cst_21 = arith.constant dense<0.000000e+00> : vector<16xf32>
    %80 = vector.multi_reduction <add>, %79, %cst_21 [1] : vector<16x256xf32> to vector<16xf32>
    %81 = vector.shape_cast %80 : vector<16xf32> to vector<16x1xf32>
    %cst_22 = arith.constant 0.00392156886 : f32
    %82 = vector.broadcast %cst_22 : f32 to vector<16x1xf32>
    %83 = arith.mulf %81, %82 : vector<16x1xf32>
    %84 = math.sqrt %83 : vector<16x1xf32>
    %cst_23 = arith.constant 1.000000e-10 : f32
    %85 = vector.broadcast %cst_23 : f32 to vector<16x1xf32>
    %86 = arith.addf %84, %85 : vector<16x1xf32>
    %87 = tpu.reciprocal %86 : vector<16x1xf32> -> vector<16x1xf32>
    %88 = arith.mulf %87, %2 : vector<16x1xf32>
    %89 = vector.broadcast %88 : vector<16x1xf32> to vector<16x256xf32>
    %90 = arith.mulf %78, %89 : vector<16x256xf32>
    %91 = vector.broadcast %3 : vector<16x1xf32> to vector<16x256xf32>
    %92 = arith.addf %90, %91 : vector<16x256xf32>
    %93 = vector.broadcast %4 : vector<16x1xf32> to vector<16x256xf32>
    %94 = arith.mulf %92, %93 : vector<16x256xf32>
    %cst_24 = arith.constant 5.000000e-01 : f32
    %95 = vector.broadcast %cst_24 : f32 to vector<16x256xf32>
    %96 = arith.mulf %95, %94 : vector<16x256xf32>
    %97 = math.tanh %96 : vector<16x256xf32>
    %cst_25 = arith.constant 5.000000e-01 : f32
    %98 = vector.broadcast %cst_25 : f32 to vector<16x256xf32>
    %99 = arith.mulf %98, %97 : vector<16x256xf32>
    %cst_26 = arith.constant 5.000000e-01 : f32
    %100 = vector.broadcast %cst_26 : f32 to vector<16x256xf32>
    %101 = arith.addf %99, %100 : vector<16x256xf32>
    %102 = arith.mulf %101, %72 : vector<16x256xf32>
    %103 = vector.extract_strided_slice %102 {offsets = [0, 0], sizes = [8, 256], strides = [1, 1]} : vector<16x256xf32> to vector<8x256xf32>
    %104 = vector.extract_strided_slice %102 {offsets = [8, 0], sizes = [8, 256], strides = [1, 1]} : vector<16x256xf32> to vector<8x256xf32>
    %105 = vector.extract_strided_slice %5 {offsets = [0, 0], sizes = [8, 1], strides = [1, 1]} : vector<16x1xf32> to vector<8x1xf32>
    %106 = vector.broadcast %105 : vector<8x1xf32> to vector<8x256xf32>
    %107 = arith.mulf %106, %103 : vector<8x256xf32>
    %108 = vector.extract_strided_slice %6 {offsets = [0, 0], sizes = [8, 1], strides = [1, 1]} : vector<16x1xf32> to vector<8x1xf32>
    %109 = vector.broadcast %108 : vector<8x1xf32> to vector<8x256xf32>
    %110 = arith.mulf %109, %104 : vector<8x256xf32>
    %111 = arith.addf %107, %110 : vector<8x256xf32>
    %112 = vector.extract_strided_slice %5 {offsets = [8, 0], sizes = [8, 1], strides = [1, 1]} : vector<16x1xf32> to vector<8x1xf32>
    %113 = vector.broadcast %112 : vector<8x1xf32> to vector<8x256xf32>
    %114 = arith.mulf %113, %104 : vector<8x256xf32>
    %115 = vector.extract_strided_slice %6 {offsets = [8, 0], sizes = [8, 1], strides = [1, 1]} : vector<16x1xf32> to vector<8x1xf32>
    %116 = vector.broadcast %115 : vector<8x1xf32> to vector<8x256xf32>
    %117 = arith.mulf %116, %103 : vector<8x256xf32>
    %118 = arith.addf %114, %117 : vector<8x256xf32>
    %119 = tpu.concatenate %111, %118 in 0 : vector<8x256xf32>, vector<8x256xf32> -> vector<16x256xf32>
    %cst_27 = arith.constant dense<0.000000e+00> : vector<16xf32>
    %120 = vector.multi_reduction <add>, %119, %cst_27 [1] : vector<16x256xf32> to vector<16xf32>
    %121 = vector.shape_cast %120 : vector<16xf32> to vector<16x1xf32>
    %122 = arith.addf %67, %121 : vector<16x1xf32>
    %cst_28 = arith.constant 0.001953125 : f32
    %123 = vector.broadcast %cst_28 : f32 to vector<16x1xf32>
    %124 = arith.mulf %122, %123 : vector<16x1xf32>
    %cst_29 = arith.constant 0.000000e+00 : f32
    %125 = vector.broadcast %cst_29 : f32 to vector<16x1xf32>
    %126 = vector.broadcast %124 : vector<16x1xf32> to vector<16x256xf32>
    %127 = arith.subf %64, %126 : vector<16x256xf32>
    %128 = arith.mulf %127, %127 : vector<16x256xf32>
    %cst_30 = arith.constant dense<0.000000e+00> : vector<16xf32>
    %129 = vector.multi_reduction <add>, %128, %cst_30 [1] : vector<16x256xf32> to vector<16xf32>
    %130 = vector.shape_cast %129 : vector<16xf32> to vector<16x1xf32>
    %131 = arith.addf %125, %130 : vector<16x1xf32>
    %132 = vector.broadcast %124 : vector<16x1xf32> to vector<16x256xf32>
    %133 = arith.subf %119, %132 : vector<16x256xf32>
    %134 = arith.mulf %133, %133 : vector<16x256xf32>
    %cst_31 = arith.constant dense<0.000000e+00> : vector<16xf32>
    %135 = vector.multi_reduction <add>, %134, %cst_31 [1] : vector<16x256xf32> to vector<16xf32>
    %136 = vector.shape_cast %135 : vector<16xf32> to vector<16x1xf32>
    %137 = arith.addf %131, %136 : vector<16x1xf32>
    %cst_32 = arith.constant 0.001953125 : f32
    %138 = vector.broadcast %cst_32 : f32 to vector<16x1xf32>
    %139 = arith.mulf %137, %138 : vector<16x1xf32>
    %cst_33 = arith.constant 9.99999974E-6 : f32
    %140 = vector.broadcast %cst_33 : f32 to vector<16x1xf32>
    %141 = arith.addf %139, %140 : vector<16x1xf32>
    %142 = math.rsqrt %141 : vector<16x1xf32>
    %143 = arith.mulf %142, %7 : vector<16x1xf32>
    %144 = vector.broadcast %143 : vector<16x1xf32> to vector<16x256xf32>
    %145 = arith.mulf %127, %144 : vector<16x256xf32>
    %146 = vector.broadcast %8 : vector<16x1xf32> to vector<16x256xf32>
    %147 = arith.addf %145, %146 : vector<16x256xf32>
    %cst_34 = arith.constant 0.000000e+00 : f32
    %148 = vector.broadcast %cst_34 : f32 to vector<16x256xf32>
    %149 = arith.maximumf %147, %148 : vector<16x256xf32>
    %cst_35 = arith.constant dense<0.000000e+00> : vector<16xf32>
    %150 = vector.multi_reduction <add>, %149, %cst_35 [1] : vector<16x256xf32> to vector<16xf32>
    %151 = vector.shape_cast %150 : vector<16xf32> to vector<16x1xf32>
    %cst_36 = arith.constant 3.906250e-03 : f32
    %152 = vector.broadcast %cst_36 : f32 to vector<16x1xf32>
    %153 = arith.mulf %151, %152 : vector<16x1xf32>
    %154 = vector.broadcast %143 : vector<16x1xf32> to vector<16x256xf32>
    %155 = arith.mulf %133, %154 : vector<16x256xf32>
    %156 = vector.broadcast %8 : vector<16x1xf32> to vector<16x256xf32>
    %157 = arith.addf %155, %156 : vector<16x256xf32>
    %cst_37 = arith.constant 0.000000e+00 : f32
    %158 = vector.broadcast %cst_37 : f32 to vector<16x256xf32>
    %159 = arith.maximumf %157, %158 : vector<16x256xf32>
    %cst_38 = arith.constant dense<0.000000e+00> : vector<16xf32>
    %160 = vector.multi_reduction <add>, %159, %cst_38 [1] : vector<16x256xf32> to vector<16xf32>
    %161 = vector.shape_cast %160 : vector<16xf32> to vector<16x1xf32>
    %cst_39 = arith.constant 3.906250e-03 : f32
    %162 = vector.broadcast %cst_39 : f32 to vector<16x1xf32>
    %163 = arith.mulf %161, %162 : vector<16x1xf32>
    %164 = tpu.concatenate %153, %163 in 1 : vector<16x1xf32>, vector<16x1xf32> -> vector<16x2xf32>
    %c0_40 = arith.constant 0 : index
    %c0_41 = arith.constant 0 : index
    %165 = vector.load %arg3[%c0_40, %c0_41] : memref<16x16xf32, #tpu.memory_space<vmem>>, vector<16x16xf32>
    %cst_42 = arith.constant dense<0.000000e+00> : vector<16x2xf32>
    %166 = tpu.matmul %165, %164, %cst_42 {dimension_numbers = #tpu.dot_dimension_numbers<[1], [0], [0], [1], [0, 0, 1, 1], [], []>} : vector<16x16xf32>, vector<16x2xf32>, vector<16x2xf32> -> vector<16x2xf32>
    %167 = vector.broadcast %9 : vector<16x1xf32> to vector<16x2xf32>
    %168 = arith.addf %166, %167 : vector<16x2xf32>
    %cst_43 = arith.constant 0.000000e+00 : f32
    %169 = vector.broadcast %cst_43 : f32 to vector<16x2xf32>
    %170 = arith.maximumf %168, %169 : vector<16x2xf32>
    %c0_44 = arith.constant 0 : index
    %c0_45 = arith.constant 0 : index
    %171 = vector.load %arg4[%c0_44, %c0_45] : memref<16x16xf32, #tpu.memory_space<vmem>>, vector<16x16xf32>
    %cst_46 = arith.constant dense<0.000000e+00> : vector<16x2xf32>
    %172 = tpu.matmul %171, %170, %cst_46 {dimension_numbers = #tpu.dot_dimension_numbers<[1], [0], [0], [1], [0, 0, 1, 1], [], []>} : vector<16x16xf32>, vector<16x2xf32>, vector<16x2xf32> -> vector<16x2xf32>
    %173 = vector.broadcast %10 : vector<16x1xf32> to vector<16x2xf32>
    %174 = arith.addf %172, %173 : vector<16x2xf32>
    %cst_47 = arith.constant 5.000000e-01 : f32
    %175 = vector.broadcast %cst_47 : f32 to vector<16x2xf32>
    %176 = arith.mulf %175, %174 : vector<16x2xf32>
    %177 = math.tanh %176 : vector<16x2xf32>
    %cst_48 = arith.constant 5.000000e-01 : f32
    %178 = vector.broadcast %cst_48 : f32 to vector<16x2xf32>
    %179 = arith.mulf %178, %177 : vector<16x2xf32>
    %cst_49 = arith.constant 5.000000e-01 : f32
    %180 = vector.broadcast %cst_49 : f32 to vector<16x2xf32>
    %181 = arith.addf %179, %180 : vector<16x2xf32>
    %182 = vector.extract_strided_slice %181 {offsets = [0, 0], sizes = [16, 1], strides = [1, 1]} : vector<16x2xf32> to vector<16x1xf32>
    %cst_50 = arith.constant 1.000000e+00 : f32
    %183 = vector.broadcast %cst_50 : f32 to vector<16x1xf32>
    %184 = arith.addf %183, %182 : vector<16x1xf32>
    %185 = vector.broadcast %184 : vector<16x1xf32> to vector<16x256xf32>
    %186 = arith.mulf %149, %185 : vector<16x256xf32>
    %c0_51 = arith.constant 0 : index
    %c0_52 = arith.constant 0 : index
    %c0_53 = arith.constant 0 : index
    %187 = vector.load %arg5[%c0_51, %c0_52, %c0_53] : memref<2x16x256xf32, #tpu.memory_space<vmem>>, vector<1x16x256xf32>
    %188 = vector.shape_cast %187 : vector<1x16x256xf32> to vector<16x256xf32>
    %189 = vector.shape_cast %186 : vector<16x256xf32> to vector<1x16x256xf32>
    tpu.vector_store %arg5[%c0_51, %c0_52, %c0_53], %189 {strides = array<i32>} : memref<2x16x256xf32, #tpu.memory_space<vmem>>, vector<1x16x256xf32>,
    %190 = vector.extract_strided_slice %181 {offsets = [0, 1], sizes = [16, 1], strides = [1, 1]} : vector<16x2xf32> to vector<16x1xf32>
    %cst_54 = arith.constant 1.000000e+00 : f32
    %191 = vector.broadcast %cst_54 : f32 to vector<16x1xf32>
    %192 = arith.addf %191, %190 : vector<16x1xf32>
    %193 = vector.broadcast %192 : vector<16x1xf32> to vector<16x256xf32>
    %194 = arith.mulf %159, %193 : vector<16x256xf32>
    %c1_55 = arith.constant 1 : index
    %c0_56 = arith.constant 0 : index
    %c0_57 = arith.constant 0 : index
    %195 = vector.load %arg5[%c1_55, %c0_56, %c0_57] : memref<2x16x256xf32, #tpu.memory_space<vmem>>, vector<1x16x256xf32>
    %196 = vector.shape_cast %195 : vector<1x16x256xf32> to vector<16x256xf32>
    %197 = vector.shape_cast %194 : vector<16x256xf32> to vector<1x16x256xf32>
    tpu.vector_store %arg5[%c1_55, %c0_56, %c0_57], %197 {strides = array<i32>} : memref<2x16x256xf32, #tpu.memory_space<vmem>>, vector<1x16x256xf32>,
    return
  }
}

</mosaic_0001>

<llo_original>
// kernel: dfwe_forward.1
$region0: #{dfwe_forward.1}
  #allocation0 [shape = 'u32[]', space=smem, size = 0x4, offset = 0x4, fixed_abs, tag = 'smem constant byte address 0x4 - core index']
  #allocation1 [shape = 'u32[72,128]{1,0:T(1,128)}', space=vmem, size = 0x9000, scoped, tag = 'internal scratch']
  %s0 = inlined_call_operand.vmem [shape: f32[2,144,256], index: 0, kind: input, shape index: {}]
  %s1 = inlined_call_operand.vmem [shape: f32[16,144], index: 1, kind: input, shape index: {}]
  %s2 = inlined_call_operand.vmem [shape: f32[16,10], index: 2, kind: input, shape index: {}]
  %s3 = inlined_call_operand.vmem [shape: f32[16,16], index: 3, kind: input, shape index: {}]
  %s4 = inlined_call_operand.vmem [shape: f32[16,16], index: 4, kind: input, shape index: {}]
  %s5 = inlined_call_operand.vmem [shape: f32[2,16,256], index: 5, kind: output, shape index: {}]
  %s6 = sld [smem:[#allocation0]]
  $region30: #{dfwe_forward.1} parent=0
    _
  %s8 = ssub.s32 1, %s6
  %s9 = scalar_select 0, %s8, %s6
  // Predicated region
  $region2: #{dfwe_forward.1} parent=0 // pred_check
    _
  $region3: #{dfwe_forward.1} parent=0 // pred_check_branch
    %11 = sbr.rel (0) target = $region5
  $region4: #{dfwe_forward.1} parent=0 // pred_region
    _
  $region5: #{dfwe_forward.1} parent=0 // pred_fallthru
    _
  // Predicated region
  $region6: #{dfwe_forward.1} parent=0 // pred_check
    _
  $region7: #{dfwe_forward.1} parent=0 // pred_check_branch
    %13 = sbr.rel (0) target = $region9
  $region8: #{dfwe_forward.1} parent=0 // pred_region
    _
  $region9: #{dfwe_forward.1} parent=0 // pred_fallthru
    _
  // Predicated region
  $region10: #{dfwe_forward.1} parent=0 // pred_check
    _
  $region11: #{dfwe_forward.1} parent=0 // pred_check_branch
    %15 = sbr.rel (0) target = $region13
  $region12: #{dfwe_forward.1} parent=0 // pred_region
    _
  $region13: #{dfwe_forward.1} parent=0 // pred_fallthru
    _
  // Predicated region
  $region14: #{dfwe_forward.1} parent=0 // pred_check
    _
  $region15: #{dfwe_forward.1} parent=0 // pred_check_branch
    %17 = sbr.rel (0) target = $region17
  $region16: #{dfwe_forward.1} parent=0 // pred_region
    _
  $region17: #{dfwe_forward.1} parent=0 // pred_fallthru
    _
  // Predicated region
  $region18: #{dfwe_forward.1} parent=0 // pred_check
    _
  $region19: #{dfwe_forward.1} parent=0 // pred_check_branch
    %19 = sbr.rel (0) target = $region21
  $region20: #{dfwe_forward.1} parent=0 // pred_region
    _
  $region21: #{dfwe_forward.1} parent=0 // pred_fallthru
    _
  %v20 = vld [vmem:[%s2] sm:$0xff]
  %v21 = vld [vmem:[%s2 + $0x8] sm:$0xff]
  %v22 = vld [vmem:[%s1] sm:$0xff]
  %v23 = vld [vmem:[%s1 + $0x8] sm:$0xff]
  %v24 = vld [vmem:[%s1 + $0x10] sm:$0xff]
  %v25 = vld [vmem:[%s1 + $0x18] sm:$0xff]
  %v26 = vld [vmem:[%s0] sm:$0xff]
  %v27 = vld [vmem:[%s0 + $0x8] sm:$0xff]
  %v28 = vld [vmem:[%s0 + $0x10] sm:$0xff]
  %v29 = vld [vmem:[%s0 + $0x18] sm:$0xff]
  %v30 = vld [vmem:[%s0 + $0x20] sm:$0xff]
  %v31 = vld [vmem:[%s0 + $0x28] sm:$0xff]
  %v32 = vld [vmem:[%s0 + $0x30] sm:$0xff]
  %v33 = vld [vmem:[%s0 + $0x38] sm:$0xff]
  %v34 = vld [vmem:[%s0 + $0x40] sm:$0xff]
  %v35 = vld [vmem:[%s0 + $0x48] sm:$0xff]
  %v36 = vld [vmem:[%s0 + $0x50] sm:$0xff]
  %v37 = vld [vmem:[%s0 + $0x58] sm:$0xff]
  %v38 = vld [vmem:[%s0 + $0x60] sm:$0xff]
  %v39 = vld [vmem:[%s0 + $0x68] sm:$0xff]
  %v40 = vld [vmem:[%s0 + $0x70] sm:$0xff]
  %v41 = vld [vmem:[%s0 + $0x78] sm:$0xff]
  %v42 = vld [vmem:[%s0 + $0x80] sm:$0xff]
  %v43 = vld [vmem:[%s0 + $0x88] sm:$0xff]
  %v44 = vld [vmem:[%s0 + $0x90] sm:$0xff]
  %v45 = vld [vmem:[%s0 + $0x98] sm:$0xff]
  %v46 = vld [vmem:[%s0 + $0xa0] sm:$0xff]
  %v47 = vld [vmem:[%s0 + $0xa8] sm:$0xff]
  %v48 = vld [vmem:[%s0 + $0xb0] sm:$0xff]
  %v49 = vld [vmem:[%s0 + $0xb8] sm:$0xff]
  %v50 = vld [vmem:[%s0 + $0xc0] sm:$0xff]
  %v51 = vld [vmem:[%s0 + $0xc8] sm:$0xff]
  %v52 = vld [vmem:[%s0 + $0xd0] sm:$0xff]
  %v53 = vld [vmem:[%s0 + $0xd8] sm:$0xff]
  %v54 = vld [vmem:[%s0 + $0xe0] sm:$0xff]
  %v55 = vld [vmem:[%s0 + $0xe8] sm:$0xff]
  %v56 = vld [vmem:[%s0 + $0xf0] sm:$0xff]
  %v57 = vld [vmem:[%s0 + $0xf8] sm:$0xff]
  %v58 = vld [vmem:[%s0 + $0x100] sm:$0xff]
  %v59 = vld [vmem:[%s0 + $0x108] sm:$0xff]
  %v60 = vld [vmem:[%s0 + $0x110] sm:$0xff]
  %v61 = vld [vmem:[%s0 + $0x118] sm:$0xff]
  %63 = vset.pattern.permute.xlu0 0
  %64 = vperm.xlu0 %63, %v20
  %v65 = vpop.permute.xlu0 %64
  %68 = vset.pattern.permute.xlu0 0
  %69 = vperm.xlu0 %68, %v21
  %v70 = vpop.permute.xlu0 %69
  %vm72 = vcmask 130048
  %v74 = vsel %vm72, %v23, 0
  %v77 = vsel %vm72, %v25, 0
  %79 = vmatpush.msra.mxu0 %v56
  %80 = vmatpush.msra.mxu0 %v54
  %81 = vmatpush.msra.mxu0 %v52
  %82 = vmatpush.msra.mxu0 %v50
  %83 = vmatpush.msra.mxu0 %v48
  %84 = vmatpush.msra.mxu0 %v46
  %85 = vmatpush.msra.mxu0 %v44
  %86 = vmatpush.msra.mxu0 %v42
  %87 = vmatpush.msra.mxu0 %v40
  %88 = vmatpush.msra.mxu0 %v38
  %89 = vmatpush.msra.mxu0 %v36
  %90 = vmatpush.msra.mxu0 %v34
  %91 = vmatpush.msra.mxu0 %v32
  %92 = vmatpush.msra.mxu0 %v30
  %93 = vmatpush.msra.mxu0 %v28
  %94 = vmatpush.msra.mxu0 %v26
  %95 = vmatmul.f32.gmra.mxu0 %v22
  %v96 = vpop.f32.mrf.mxu0
  %v97 = vadd.f32 %v65, %v96
  %98 = vmatmul.f32.gmra.mxu0 %v24
  %v99 = vpop.f32.mrf.mxu0
  %v100 = vadd.f32 %v70, %v99
  %101 = vdwg.mxu0
  %102 = vmatpush.msra.mxu0 0.0
  %103 = vmatpush.msra.mxu0 0.0
  %104 = vmatpush.msra.mxu0 0.0
  %105 = vmatpush.msra.mxu0 0.0
  %106 = vmatpush.msra.mxu0 0.0
  %107 = vmatpush.msra.mxu0 0.0
  %108 = vmatpush.msra.mxu0 0.0
  %109 = vmatpush.msra.mxu0 0.0
  %110 = vmatpush.msra.mxu0 0.0
  %111 = vmatpush.msra.mxu0 0.0
  %112 = vmatpush.msra.mxu0 0.0
  %113 = vmatpush.msra.mxu0 0.0
  %114 = vmatpush.msra.mxu0 0.0
  %115 = vmatpush.msra.mxu0 0.0
  %116 = vmatpush.msra.mxu0 %v60
  %117 = vmatpush.msra.mxu0 %v58
  %118 = vmatmul.f32.gmra.mxu0 %v74
  %v119 = vpop.f32.mrf.mxu0
  %v120 = vadd.f32 %v97, %v119
  %121 = vmatmul.f32.gmra.mxu0 %v77
  %v122 = vpop.f32.mrf.mxu0
  %v123 = vadd.f32 %v100, %v122
  %124 = vdwg.mxu0
  %125 = vmatpush.msra.mxu0 %v57
  %126 = vmatpush.msra.mxu0 %v55
  %127 = vmatpush.msra.mxu0 %v53
  %128 = vmatpush.msra.mxu0 %v51
  %129 = vmatpush.msra.mxu0 %v49
  %130 = vmatpush.msra.mxu0 %v47
  %131 = vmatpush.msra.mxu0 %v45
  %132 = vmatpush.msra.mxu0 %v43
  %133 = vmatpush.msra.mxu0 %v41
  %134 = vmatpush.msra.mxu0 %v39
  %135 = vmatpush.msra.mxu0 %v37
  %136 = vmatpush.msra.mxu0 %v35
  %137 = vmatpush.msra.mxu0 %v33
  %138 = vmatpush.msra.mxu0 %v31
  %139 = vmatpush.msra.mxu0 %v29
  %140 = vmatpush.msra.mxu0 %v27
  %141 = vmatmul.f32.gmra.mxu0 %v22
  %v142 = vpop.f32.mrf.mxu0
  %v143 = vadd.f32 %v65, %v142
  %144 = vmatmul.f32.gmra.mxu0 %v24
  %v145 = vpop.f32.mrf.mxu0
  %v146 = vadd.f32 %v70, %v145
  %147 = vdwg.mxu0
  %148 = vmatpush.msra.mxu0 0.0
  %149 = vmatpush.msra.mxu0 0.0
  %150 = vmatpush.msra.mxu0 0.0
  %151 = vmatpush.msra.mxu0 0.0
  %152 = vmatpush.msra.mxu0 0.0
  %153 = vmatpush.msra.mxu0 0.0
  %154 = vmatpush.msra.mxu0 0.0
  %155 = vmatpush.msra.mxu0 0.0
  %156 = vmatpush.msra.mxu0 0.0
  %157 = vmatpush.msra.mxu0 0.0
  %158 = vmatpush.msra.mxu0 0.0
  %159 = vmatpush.msra.mxu0 0.0
  %160 = vmatpush.msra.mxu0 0.0
  %161 = vmatpush.msra.mxu0 0.0
  %162 = vmatpush.msra.mxu0 %v61
  %163 = vmatpush.msra.mxu0 %v59
  %164 = vmatmul.f32.gmra.mxu0 %v74
  %v165 = vpop.f32.mrf.mxu0
  %v166 = vadd.f32 %v143, %v165
  %167 = vmatmul.f32.gmra.mxu0 %v77
  %v168 = vpop.f32.mrf.mxu0
  %v169 = vadd.f32 %v146, %v168
  %170 = vdwg.mxu0
  %v171 = vadd.f32 %v120, %v166
  %172 = vadd.xlane.f32.xlu0 %v171
  %v173 = vpop.xlane.xlu0 %172
  %v174 = vadd.f32 %v123, %v169
  %175 = vadd.xlane.f32.xlu0 %v174
  %v176 = vpop.xlane.xlu0 %175
  %v177 = vmul.f32 %v173, 0.00390625
  %v178 = vmul.f32 %v176, 0.00390625
  %v179 = vsub.f32 %v120, %v177
  %v180 = vsub.f32 %v166, %v177
  %v181 = vsub.f32 %v123, %v178
  %v182 = vsub.f32 %v169, %v178
  %v183 = vmul.f32 %v179, %v179
  %v184 = vmul.f32 %v180, %v180
  %v185 = vmul.f32 %v181, %v181
  %v186 = vmul.f32 %v182, %v182
  %v187 = vadd.f32 %v183, %v184
  %188 = vadd.xlane.f32.xlu0 %v187
  %v189 = vpop.xlane.xlu0 %188
  %v190 = vadd.f32 %v185, %v186
  %191 = vadd.xlane.f32.xlu0 %v190
  %v192 = vpop.xlane.xlu0 %191
  %v193 = vmul.f32 %v189, 0.003921569
  %v194 = vmul.f32 %v192, 0.003921569
  %v195 = vrsqrt.pop %v193
  %v196 = vmul.f32 %v195, %v193
  %v197 = vmul.f32 %v196, %v195
  %v198 = vmul.f32 0.5, %v197
  %v199 = vsub.f32 1.5, %v198
  %v200 = vmul.f32 %v195, %v199
  %v201 = vmul.f32 %v193, %v200
  %vm202 = vcmp.eq.f32.partialorder %v193, inf
  %v203 = vsel %vm202, %v193, %v201
  %vm204 = vcmp.eq.f32.partialorder %v193, 0.0
  %v205 = vand.u32 %v193, 2147483648
  %v206 = vsel %vm204, %v205, %v203
  %v207 = vrsqrt.pop %v194
  %v208 = vmul.f32 %v207, %v194
  %v209 = vmul.f32 %v208, %v207
  %v210 = vmul.f32 0.5, %v209
  %v211 = vsub.f32 1.5, %v210
  %v212 = vmul.f32 %v207, %v211
  %v213 = vmul.f32 %v194, %v212
  %vm214 = vcmp.eq.f32.partialorder %v194, inf
  %v215 = vsel %vm214, %v194, %v213
  %vm216 = vcmp.eq.f32.partialorder %v194, 0.0
  %v217 = vand.u32 %v194, 2147483648
  %v218 = vsel %vm216, %v217, %v215
  %v219 = vadd.f32 %v206, 1e-10
  %v220 = vadd.f32 %v218, 1e-10
  %v221 = vrcp.pop %v219
  %v222 = vmul.f32 %v219, %v221
  %v223 = vsub.f32 1.0, %v222
  %v224 = vmul.f32 %v221, %v223
  %v225 = vadd.f32 %v221, %v224
  %vm226 = vweird.f32 %v219
  %vm227 = vweird.f32 %v221
  %vm228 = vmor %vm226, %vm227
  %v229 = vsel %vm228, %v221, %v225
  %v230 = vand.u32 2147483647, %v219
  %vm231 = vcmp.eq.f32.partialorder %v230, 8.507059e+37
  %v232 = vand.u32 %v219, 2147483648
  %v233 = vor.u32 1.1754944e-38, %v232
  %v234 = vsel %vm231, %v233, %v229
  %v235 = vrcp.pop %v220
  %v236 = vmul.f32 %v220, %v235
  %v237 = vsub.f32 1.0, %v236
  %v238 = vmul.f32 %v235, %v237
  %v239 = vadd.f32 %v235, %v238
  %vm240 = vweird.f32 %v220
  %vm241 = vweird.f32 %v235
  %vm242 = vmor %vm240, %vm241
  %v243 = vsel %vm242, %v235, %v239
  %v244 = vand.u32 2147483647, %v220
  %vm245 = vcmp.eq.f32.partialorder %v244, 8.507059e+37
  %v246 = vand.u32 %v220, 2147483648
  %v247 = vor.u32 1.1754944e-38, %v246
  %v248 = vsel %vm245, %v247, %v243
  %v249 = vmul.f32 %v234, %v20
  %v250 = vmul.f32 %v248, %v21
  %252 = vset.pattern.permute.xlu0 1
  %253 = vperm.xlu0 %252, %v249
  %v254 = vpop.permute.xlu0 %253
  %257 = vset.pattern.permute.xlu0 1
  %258 = vperm.xlu0 %257, %v250
  %v259 = vpop.permute.xlu0 %258
  %v261 = vmul.f32 %v179, %v254
  %v262 = vmul.f32 %v180, %v254
  %v263 = vmul.f32 %v181, %v259
  %v264 = vmul.f32 %v182, %v259
  %265 = vset.pattern.permute.xlu0 2
  %266 = vperm.xlu0 %265, %v20
  %v267 = vpop.permute.xlu0 %266
  %269 = vset.pattern.permute.xlu0 2
  %270 = vperm.xlu0 %269, %v21
  %v271 = vpop.permute.xlu0 %270
  %v273 = vadd.f32 %v261, %v267
  %v274 = vadd.f32 %v262, %v267
  %v275 = vadd.f32 %v263, %v271
  %v276 = vadd.f32 %v264, %v271
  %277 = vset.pattern.permute.xlu0 3
  %278 = vperm.xlu0 %277, %v20
  %v279 = vpop.permute.xlu0 %278
  %281 = vset.pattern.permute.xlu0 3
  %282 = vperm.xlu0 %281, %v21
  %v283 = vpop.permute.xlu0 %282
  %v285 = vmul.f32 %v273, %v279
  %v286 = vmul.f32 %v274, %v279
  %v287 = vmul.f32 %v275, %v283
  %v288 = vmul.f32 %v276, %v283
  %v289 = vmul.f32 %v285, 0.5
  %v290 = vmul.f32 %v286, 0.5
  %v291 = vmul.f32 %v287, 0.5
  %v292 = vmul.f32 %v288, 0.5
  %v293 = vtanh.pop %v289
  %v294 = vtanh.pop %v290
  %v295 = vtanh.pop %v291
  %v296 = vtanh.pop %v292
  %v297 = vmul.f32 %v293, 0.5
  %v298 = vmul.f32 %v294, 0.5
  %v299 = vmul.f32 %v295, 0.5
  %v300 = vmul.f32 %v296, 0.5
  %v301 = vadd.f32 %v297, 0.5
  %v302 = vadd.f32 %v298, 0.5
  %v303 = vadd.f32 %v299, 0.5
  %v304 = vadd.f32 %v300, 0.5
  %v305 = vmul.f32 %v301, %v120
  %v306 = vmul.f32 %v302, %v166
  %v307 = vmul.f32 %v303, %v123
  %v308 = vmul.f32 %v304, %v169
  %309 = vset.pattern.permute.xlu0 4
  %310 = vperm.xlu0 %309, %v20
  %v311 = vpop.permute.xlu0 %310
  %v313 = vmul.f32 %v311, %v305
  %v314 = vmul.f32 %v311, %v306
  %315 = vset.pattern.permute.xlu0 5
  %316 = vperm.xlu0 %315, %v20
  %v317 = vpop.permute.xlu0 %316
  %v319 = vmul.f32 %v317, %v307
  %v320 = vmul.f32 %v317, %v308
  %v321 = vadd.f32 %v313, %v319
  %v322 = vadd.f32 %v314, %v320
  %323 = vset.pattern.permute.xlu0 4
  %324 = vperm.xlu0 %323, %v21
  %v325 = vpop.permute.xlu0 %324
  %v327 = vmul.f32 %v325, %v307
  %v328 = vmul.f32 %v325, %v308
  %329 = vset.pattern.permute.xlu0 5
  %330 = vperm.xlu0 %329, %v21
  %v331 = vpop.permute.xlu0 %330
  %v333 = vmul.f32 %v331, %v305
  %v334 = vmul.f32 %v331, %v306
  %v335 = vadd.f32 %v327, %v333
  %v336 = vadd.f32 %v328, %v334
  %v337 = vadd.f32 %v321, %v322
  %338 = vadd.xlane.f32.xlu0 %v337
  %v339 = vpop.xlane.xlu0 %338
  %v340 = vadd.f32 %v335, %v336
  %341 = vadd.xlane.f32.xlu0 %v340
  %v342 = vpop.xlane.xlu0 %341
  %v343 = vadd.f32 %v339, 0.0
  %v344 = vadd.f32 %v342, 0.0
  %s345 = scalar_lea.vmem %s0, 288
  %v346 = vld [vmem:[%s345] sm:$0xff]
  %v347 = vld [vmem:[%s345 + $0x8] sm:$0xff]
  %v348 = vld [vmem:[%s345 + $0x10] sm:$0xff]
  %v349 = vld [vmem:[%s345 + $0x18] sm:$0xff]
  %v350 = vld [vmem:[%s345 + $0x20] sm:$0xff]
  %v351 = vld [vmem:[%s345 + $0x28] sm:$0xff]
  %v352 = vld [vmem:[%s345 + $0x30] sm:$0xff]
  %v353 = vld [vmem:[%s345 + $0x38] sm:$0xff]
  %v354 = vld [vmem:[%s345 + $0x40] sm:$0xff]
  %v355 = vld [vmem:[%s345 + $0x48] sm:$0xff]
  %v356 = vld [vmem:[%s345 + $0x50] sm:$0xff]
  %v357 = vld [vmem:[%s345 + $0x58] sm:$0xff]
  %v358 = vld [vmem:[%s345 + $0x60] sm:$0xff]
  %v359 = vld [vmem:[%s345 + $0x68] sm:$0xff]
  %v360 = vld [vmem:[%s345 + $0x70] sm:$0xff]
  %v361 = vld [vmem:[%s345 + $0x78] sm:$0xff]
  %v362 = vld [vmem:[%s345 + $0x80] sm:$0xff]
  %v363 = vld [vmem:[%s345 + $0x88] sm:$0xff]
  %v364 = vld [vmem:[%s345 + $0x90] sm:$0xff]
  %v365 = vld [vmem:[%s345 + $0x98] sm:$0xff]
  %v366 = vld [vmem:[%s345 + $0xa0] sm:$0xff]
  %v367 = vld [vmem:[%s345 + $0xa8] sm:$0xff]
  %v368 = vld [vmem:[%s345 + $0xb0] sm:$0xff]
  %v369 = vld [vmem:[%s345 + $0xb8] sm:$0xff]
  %v370 = vld [vmem:[%s345 + $0xc0] sm:$0xff]
  %v371 = vld [vmem:[%s345 + $0xc8] sm:$0xff]
  %v372 = vld [vmem:[%s345 + $0xd0] sm:$0xff]
  %v373 = vld [vmem:[%s345 + $0xd8] sm:$0xff]
  %v374 = vld [vmem:[%s345 + $0xe0] sm:$0xff]
  %v375 = vld [vmem:[%s345 + $0xe8] sm:$0xff]
  %v376 = vld [vmem:[%s345 + $0xf0] sm:$0xff]
  %v377 = vld [vmem:[%s345 + $0xf8] sm:$0xff]
  %v378 = vld [vmem:[%s345 + $0x100] sm:$0xff]
  %v379 = vld [vmem:[%s345 + $0x108] sm:$0xff]
  %v380 = vld [vmem:[%s345 + $0x110] sm:$0xff]
  %v381 = vld [vmem:[%s345 + $0x118] sm:$0xff]
  %382 = vmatpush.msra.mxu0 %v376
  %383 = vmatpush.msra.mxu0 %v374
  %384 = vmatpush.msra.mxu0 %v372
  %385 = vmatpush.msra.mxu0 %v370
  %386 = vmatpush.msra.mxu0 %v368
  %387 = vmatpush.msra.mxu0 %v366
  %388 = vmatpush.msra.mxu0 %v364
  %389 = vmatpush.msra.mxu0 %v362
  %390 = vmatpush.msra.mxu0 %v360
  %391 = vmatpush.msra.mxu0 %v358
  %392 = vmatpush.msra.mxu0 %v356
  %393 = vmatpush.msra.mxu0 %v354
  %394 = vmatpush.msra.mxu0 %v352
  %395 = vmatpush.msra.mxu0 %v350
  %396 = vmatpush.msra.mxu0 %v348
  %397 = vmatpush.msra.mxu0 %v346
  %398 = vmatmul.f32.gmra.mxu0 %v22
  %v399 = vpop.f32.mrf.mxu0
  %v400 = vadd.f32 %v65, %v399
  %401 = vmatmul.f32.gmra.mxu0 %v24
  %v402 = vpop.f32.mrf.mxu0
  %v403 = vadd.f32 %v70, %v402
  %404 = vdwg.mxu0
  %405 = vmatpush.msra.mxu0 0.0
  %406 = vmatpush.msra.mxu0 0.0
  %407 = vmatpush.msra.mxu0 0.0
  %408 = vmatpush.msra.mxu0 0.0
  %409 = vmatpush.msra.mxu0 0.0
  %410 = vmatpush.msra.mxu0 0.0
  %411 = vmatpush.msra.mxu0 0.0
  %412 = vmatpush.msra.mxu0 0.0
  %413 = vmatpush.msra.mxu0 0.0
  %414 = vmatpush.msra.mxu0 0.0
  %415 = vmatpush.msra.mxu0 0.0
  %416 = vmatpush.msra.mxu0 0.0
  %417 = vmatpush.msra.mxu0 0.0
  %418 = vmatpush.msra.mxu0 0.0
  %419 = vmatpush.msra.mxu0 %v380
  %420 = vmatpush.msra.mxu0 %v378
  %421 = vmatmul.f32.gmra.mxu0 %v74
  %v422 = vpop.f32.mrf.mxu0
  %v423 = vadd.f32 %v400, %v422
  %424 = vmatmul.f32.gmra.mxu0 %v77
  %v425 = vpop.f32.mrf.mxu0
  %v426 = vadd.f32 %v403, %v425
  %427 = vdwg.mxu0
  %428 = vmatpush.msra.mxu0 %v377
  %429 = vmatpush.msra.mxu0 %v375
  %430 = vmatpush.msra.mxu0 %v373
  %431 = vmatpush.msra.mxu0 %v371
  %432 = vmatpush.msra.mxu0 %v369
  %433 = vmatpush.msra.mxu0 %v367
  %434 = vmatpush.msra.mxu0 %v365
  %435 = vmatpush.msra.mxu0 %v363
  %436 = vmatpush.msra.mxu0 %v361
  %437 = vmatpush.msra.mxu0 %v359
  %438 = vmatpush.msra.mxu0 %v357
  %439 = vmatpush.msra.mxu0 %v355
  %440 = vmatpush.msra.mxu0 %v353
  %441 = vmatpush.msra.mxu0 %v351
  %442 = vmatpush.msra.mxu0 %v349
  %443 = vmatpush.msra.mxu0 %v347
  %444 = vmatmul.f32.gmra.mxu0 %v22
  %v445 = vpop.f32.mrf.mxu0
  %v446 = vadd.f32 %v65, %v445
  %447 = vmatmul.f32.gmra.mxu0 %v24
  %v448 = vpop.f32.mrf.mxu0
  %v449 = vadd.f32 %v70, %v448
  %450 = vdwg.mxu0
  %451 = vmatpush.msra.mxu0 0.0
  %452 = vmatpush.msra.mxu0 0.0
  %453 = vmatpush.msra.mxu0 0.0
  %454 = vmatpush.msra.mxu0 0.0
  %455 = vmatpush.msra.mxu0 0.0
  %456 = vmatpush.msra.mxu0 0.0
  %457 = vmatpush.msra.mxu0 0.0
  %458 = vmatpush.msra.mxu0 0.0
  %459 = vmatpush.msra.mxu0 0.0
  %460 = vmatpush.msra.mxu0 0.0
  %461 = vmatpush.msra.mxu0 0.0
  %462 = vmatpush.msra.mxu0 0.0
  %463 = vmatpush.msra.mxu0 0.0
  %464 = vmatpush.msra.mxu0 0.0
  %465 = vmatpush.msra.mxu0 %v381
  %466 = vmatpush.msra.mxu0 %v379
  %467 = vmatmul.f32.gmra.mxu0 %v74
  %v468 = vpop.f32.mrf.mxu0
  %v469 = vadd.f32 %v446, %v468
  %470 = vmatmul.f32.gmra.mxu0 %v77
  %v471 = vpop.f32.mrf.mxu0
  %v472 = vadd.f32 %v449, %v471
  %473 = vdwg.mxu0
  %v474 = vadd.f32 %v423, %v469
  %475 = vadd.xlane.f32.xlu0 %v474
  %v476 = vpop.xlane.xlu0 %475
  %v477 = vadd.f32 %v426, %v472
  %478 = vadd.xlane.f32.xlu0 %v477
  %v479 = vpop.xlane.xlu0 %478
  %v480 = vmul.f32 %v476, 0.00390625
  %v481 = vmul.f32 %v479, 0.00390625
  %v482 = vsub.f32 %v423, %v480
  %v483 = vsub.f32 %v469, %v480
  %v484 = vsub.f32 %v426, %v481
  %v485 = vsub.f32 %v472, %v481
  %v486 = vmul.f32 %v482, %v482
  %v487 = vmul.f32 %v483, %v483
  %v488 = vmul.f32 %v484, %v484
  %v489 = vmul.f32 %v485, %v485
  %v490 = vadd.f32 %v486, %v487
  %491 = vadd.xlane.f32.xlu0 %v490
  %v492 = vpop.xlane.xlu0 %491
  %v493 = vadd.f32 %v488, %v489
  %494 = vadd.xlane.f32.xlu0 %v493
  %v495 = vpop.xlane.xlu0 %494
  %v496 = vmul.f32 %v492, 0.003921569
  %v497 = vmul.f32 %v495, 0.003921569
  %v498 = vrsqrt.pop %v496
  %v499 = vmul.f32 %v498, %v496
  %v500 = vmul.f32 %v499, %v498
  %v501 = vmul.f32 0.5, %v500
  %v502 = vsub.f32 1.5, %v501
  %v503 = vmul.f32 %v498, %v502
  %v504 = vmul.f32 %v496, %v503
  %vm505 = vcmp.eq.f32.partialorder %v496, inf
  %v506 = vsel %vm505, %v496, %v504
  %vm507 = vcmp.eq.f32.partialorder %v496, 0.0
  %v508 = vand.u32 %v496, 2147483648
  %v509 = vsel %vm507, %v508, %v506
  %v510 = vrsqrt.pop %v497
  %v511 = vmul.f32 %v510, %v497
  %v512 = vmul.f32 %v511, %v510
  %v513 = vmul.f32 0.5, %v512
  %v514 = vsub.f32 1.5, %v513
  %v515 = vmul.f32 %v510, %v514
  %v516 = vmul.f32 %v497, %v515
  %vm517 = vcmp.eq.f32.partialorder %v497, inf
  %v518 = vsel %vm517, %v497, %v516
  %vm519 = vcmp.eq.f32.partialorder %v497, 0.0
  %v520 = vand.u32 %v497, 2147483648
  %v521 = vsel %vm519, %v520, %v518
  %v522 = vadd.f32 %v509, 1e-10
  %v523 = vadd.f32 %v521, 1e-10
  %v524 = vrcp.pop %v522
  %v525 = vmul.f32 %v522, %v524
  %v526 = vsub.f32 1.0, %v525
  %v527 = vmul.f32 %v524, %v526
  %v528 = vadd.f32 %v524, %v527
  %vm529 = vweird.f32 %v522
  %vm530 = vweird.f32 %v524
  %vm531 = vmor %vm529, %vm530
  %v532 = vsel %vm531, %v524, %v528
  %v533 = vand.u32 2147483647, %v522
  %vm534 = vcmp.eq.f32.partialorder %v533, 8.507059e+37
  %v535 = vand.u32 %v522, 2147483648
  %v536 = vor.u32 1.1754944e-38, %v535
  %v537 = vsel %vm534, %v536, %v532
  %v538 = vrcp.pop %v523
  %v539 = vmul.f32 %v523, %v538
  %v540 = vsub.f32 1.0, %v539
  %v541 = vmul.f32 %v538, %v540
  %v542 = vadd.f32 %v538, %v541
  %vm543 = vweird.f32 %v523
  %vm544 = vweird.f32 %v538
  %vm545 = vmor %vm543, %vm544
  %v546 = vsel %vm545, %v538, %v542
  %v547 = vand.u32 2147483647, %v523
  %vm548 = vcmp.eq.f32.partialorder %v547, 8.507059e+37
  %v549 = vand.u32 %v523, 2147483648
  %v550 = vor.u32 1.1754944e-38, %v549
  %v551 = vsel %vm548, %v550, %v546
  %v552 = vmul.f32 %v537, %v20
  %v553 = vmul.f32 %v551, %v21
  %555 = vset.pattern.permute.xlu0 1
  %556 = vperm.xlu0 %555, %v552
  %v557 = vpop.permute.xlu0 %556
  %560 = vset.pattern.permute.xlu0 1
  %561 = vperm.xlu0 %560, %v553
  %v562 = vpop.permute.xlu0 %561
  %v564 = vmul.f32 %v482, %v557
  %v565 = vmul.f32 %v483, %v557
  %v566 = vmul.f32 %v484, %v562
  %v567 = vmul.f32 %v485, %v562
  %v568 = vadd.f32 %v564, %v267
  %v569 = vadd.f32 %v565, %v267
  %v570 = vadd.f32 %v566, %v271
  %v571 = vadd.f32 %v567, %v271
  %v572 = vmul.f32 %v568, %v279
  %v573 = vmul.f32 %v569, %v279
  %v574 = vmul.f32 %v570, %v283
  %v575 = vmul.f32 %v571, %v283
  %v576 = vmul.f32 %v572, 0.5
  %v577 = vmul.f32 %v573, 0.5
  %v578 = vmul.f32 %v574, 0.5
  %v579 = vmul.f32 %v575, 0.5
  %v580 = vtanh.pop %v576
  %v581 = vtanh.pop %v577
  %v582 = vtanh.pop %v578
  %v583 = vtanh.pop %v579
  %v584 = vmul.f32 %v580, 0.5
  %v585 = vmul.f32 %v581, 0.5
  %v586 = vmul.f32 %v582, 0.5
  %v587 = vmul.f32 %v583, 0.5
  %v588 = vadd.f32 %v584, 0.5
  %v589 = vadd.f32 %v585, 0.5
  %v590 = vadd.f32 %v586, 0.5
  %v591 = vadd.f32 %v587, 0.5
  %v592 = vmul.f32 %v588, %v423
  %v593 = vmul.f32 %v589, %v469
  %v594 = vmul.f32 %v590, %v426
  %v595 = vmul.f32 %v591, %v472
  %v596 = vmul.f32 %v311, %v592
  %v597 = vmul.f32 %v311, %v593
  %v598 = vmul.f32 %v317, %v594
  %v599 = vmul.f32 %v317, %v595
  %v600 = vadd.f32 %v596, %v598
  %v601 = vadd.f32 %v597, %v599
  %v602 = vmul.f32 %v325, %v594
  %v603 = vmul.f32 %v325, %v595
  %v604 = vmul.f32 %v331, %v592
  %v605 = vmul.f32 %v331, %v593
  %v606 = vadd.f32 %v602, %v604
  %v607 = vadd.f32 %v603, %v605
  %v608 = vadd.f32 %v600, %v601
  %609 = vadd.xlane.f32.xlu0 %v608
  %v610 = vpop.xlane.xlu0 %609
  %v611 = vadd.f32 %v606, %v607
  %612 = vadd.xlane.f32.xlu0 %v611
  %v613 = vpop.xlane.xlu0 %612
  %v614 = vadd.f32 %v343, %v610
  %v615 = vadd.f32 %v344, %v613
  %v616 = vmul.f32 %v614, 0.001953125
  %v617 = vmul.f32 %v615, 0.001953125
  %v618 = vsub.f32 %v321, %v616
  %v619 = vsub.f32 %v322, %v616
  %v620 = vsub.f32 %v335, %v617
  %v621 = vsub.f32 %v336, %v617
  %v622 = vmul.f32 %v618, %v618
  %v623 = vmul.f32 %v619, %v619
  %v624 = vmul.f32 %v620, %v620
  %v625 = vmul.f32 %v621, %v621
  %v626 = vadd.f32 %v622, %v623
  %627 = vadd.xlane.f32.xlu0 %v626
  %v628 = vpop.xlane.xlu0 %627
  %v629 = vadd.f32 %v624, %v625
  %630 = vadd.xlane.f32.xlu0 %v629
  %v631 = vpop.xlane.xlu0 %630
  %v632 = vadd.f32 %v628, 0.0
  %v633 = vadd.f32 %v631, 0.0
  %v634 = vsub.f32 %v600, %v616
  %v635 = vsub.f32 %v601, %v616
  %v636 = vsub.f32 %v606, %v617
  %v637 = vsub.f32 %v607, %v617
  %v638 = vmul.f32 %v634, %v634
  %v639 = vmul.f32 %v635, %v635
  %v640 = vmul.f32 %v636, %v636
  %v641 = vmul.f32 %v637, %v637
  %v642 = vadd.f32 %v638, %v639
  %643 = vadd.xlane.f32.xlu0 %v642
  %v644 = vpop.xlane.xlu0 %643
  %v645 = vadd.f32 %v640, %v641
  %646 = vadd.xlane.f32.xlu0 %v645
  %v647 = vpop.xlane.xlu0 %646
  %v648 = vadd.f32 %v632, %v644
  %v649 = vadd.f32 %v633, %v647
  %v650 = vmul.f32 %v648, 0.001953125
  %v651 = vmul.f32 %v649, 0.001953125
  %v652 = vadd.f32 %v650, 1e-05
  %v653 = vadd.f32 %v651, 1e-05
  %v654 = vrsqrt.pop %v652
  %v655 = vmul.f32 %v654, %v652
  %v656 = vmul.f32 %v655, %v654
  %v657 = vmul.f32 0.5, %v656
  %v658 = vsub.f32 1.5, %v657
  %v659 = vmul.f32 %v654, %v658
  %vm660 = vweird.f32 %v652
  %vm661 = vweird.f32 %v654
  %vm662 = vmor %vm660, %vm661
  %v663 = vsel %vm662, %v654, %v659
  %v664 = vrsqrt.pop %v653
  %v665 = vmul.f32 %v664, %v653
  %v666 = vmul.f32 %v665, %v664
  %v667 = vmul.f32 0.5, %v666
  %v668 = vsub.f32 1.5, %v667
  %v669 = vmul.f32 %v664, %v668
  %vm670 = vweird.f32 %v653
  %vm671 = vweird.f32 %v664
  %vm672 = vmor %vm670, %vm671
  %v673 = vsel %vm672, %v664, %v669
  %v674 = vmul.f32 %v663, %v20
  %v675 = vmul.f32 %v673, %v21
  %677 = vset.pattern.permute.xlu0 6
  %678 = vperm.xlu0 %677, %v674
  %v679 = vpop.permute.xlu0 %678
  %682 = vset.pattern.permute.xlu0 6
  %683 = vperm.xlu0 %682, %v675
  %v684 = vpop.permute.xlu0 %683
  %v686 = vmul.f32 %v618, %v679
  %v687 = vmul.f32 %v619, %v679
  %v688 = vmul.f32 %v620, %v684
  %v689 = vmul.f32 %v621, %v684
  %690 = vset.pattern.permute.xlu0 7
  %691 = vperm.xlu0 %690, %v20
  %v692 = vpop.permute.xlu0 %691
  %694 = vset.pattern.permute.xlu0 7
  %695 = vperm.xlu0 %694, %v21
  %v696 = vpop.permute.xlu0 %695
  %v698 = vadd.f32 %v686, %v692
  %v699 = vadd.f32 %v687, %v692
  %v700 = vadd.f32 %v688, %v696
  %v701 = vadd.f32 %v689, %v696
  %v702 = vmax.f32 %v698, 0.0
  %v703 = vmax.f32 %v699, 0.0
  %v704 = vmax.f32 %v700, 0.0
  %v705 = vmax.f32 %v701, 0.0
  %v706 = vadd.f32 %v702, %v703
  %707 = vadd.xlane.f32.xlu0 %v706
  %v708 = vpop.xlane.xlu0 %707
  %v709 = vadd.f32 %v704, %v705
  %710 = vadd.xlane.f32.xlu0 %v709
  %v711 = vpop.xlane.xlu0 %710
  %v712 = vmul.f32 %v708, 0.00390625
  %v713 = vmul.f32 %v711, 0.00390625
  %v714 = vmul.f32 %v634, %v679
  %v715 = vmul.f32 %v635, %v679
  %v716 = vmul.f32 %v636, %v684
  %v717 = vmul.f32 %v637, %v684
  %v718 = vadd.f32 %v714, %v692
  %v719 = vadd.f32 %v715, %v692
  %v720 = vadd.f32 %v716, %v696
  %v721 = vadd.f32 %v717, %v696
  %v722 = vmax.f32 %v718, 0.0
  %v723 = vmax.f32 %v719, 0.0
  %v724 = vmax.f32 %v720, 0.0
  %v725 = vmax.f32 %v721, 0.0
  %v726 = vadd.f32 %v722, %v723
  %727 = vadd.xlane.f32.xlu0 %v726
  %v728 = vpop.xlane.xlu0 %727
  %v729 = vadd.f32 %v724, %v725
  %730 = vadd.xlane.f32.xlu0 %v729
  %v731 = vpop.xlane.xlu0 %730
  %v732 = vmul.f32 %v728, 0.00390625
  %v733 = vmul.f32 %v731, 0.00390625
  %vm734 = vcmask 7168
  %v735 = vsel %vm734, %v712, %v732
  %v736 = vsel %vm734, %v713, %v733
  %v737 = vld [vmem:[%s3] sm:$0xff]
  %v738 = vld [vmem:[%s3 + $0x8] sm:$0xff]
  %739 = vset.pattern.permute.xlu0 8
  %740 = vperm.xlu0 %739, %v20
  %v741 = vpop.permute.xlu0 %740
  %743 = vset.pattern.permute.xlu0 8
  %744 = vperm.xlu0 %743, %v21
  %v745 = vpop.permute.xlu0 %744
  %v748 = vsel %vm72, %v737, 0
  %v751 = vsel %vm72, %v738, 0
  %753 = vmatpush.msra.mxu0 0.0
  %754 = vmatpush.msra.mxu0 0.0
  %755 = vmatpush.msra.mxu0 0.0
  %756 = vmatpush.msra.mxu0 0.0
  %757 = vmatpush.msra.mxu0 0.0
  %758 = vmatpush.msra.mxu0 0.0
  %759 = vmatpush.msra.mxu0 0.0
  %760 = vmatpush.msra.mxu0 0.0
  %761 = vmatpush.msra.mxu0 0.0
  %762 = vmatpush.msra.mxu0 0.0
  %763 = vmatpush.msra.mxu0 0.0
  %764 = vmatpush.msra.mxu0 0.0
  %765 = vmatpush.msra.mxu0 0.0
  %766 = vmatpush.msra.mxu0 0.0
  %767 = vmatpush.msra.mxu0 %v736
  %768 = vmatpush.msra.mxu0 %v735
  %769 = vmatmul.f32.gmra.mxu0 %v748
  %v770 = vpop.f32.mrf.mxu0
  %v771 = vadd.f32 %v741, %v770
  %772 = vmatmul.f32.gmra.mxu0 %v751
  %v773 = vpop.f32.mrf.mxu0
  %v774 = vadd.f32 %v745, %v773
  %775 = vdwg.mxu0
  %v776 = vmax.f32 %v771, 0.0
  %v777 = vmax.f32 %v774, 0.0
  %v778 = vld [vmem:[%s4] sm:$0xff]
  %v779 = vld [vmem:[%s4 + $0x8] sm:$0xff]
  %780 = vset.pattern.permute.xlu0 9
  %781 = vperm.xlu0 %780, %v20
  %v782 = vpop.permute.xlu0 %781
  %784 = vset.pattern.permute.xlu0 9
  %785 = vperm.xlu0 %784, %v21
  %v786 = vpop.permute.xlu0 %785
  %v789 = vsel %vm72, %v778, 0
  %v792 = vsel %vm72, %v779, 0
  %794 = vmatpush.msra.mxu0 0.0
  %795 = vmatpush.msra.mxu0 0.0
  %796 = vmatpush.msra.mxu0 0.0
  %797 = vmatpush.msra.mxu0 0.0
  %798 = vmatpush.msra.mxu0 0.0
  %799 = vmatpush.msra.mxu0 0.0
  %800 = vmatpush.msra.mxu0 0.0
  %801 = vmatpush.msra.mxu0 0.0
  %802 = vmatpush.msra.mxu0 0.0
  %803 = vmatpush.msra.mxu0 0.0
  %804 = vmatpush.msra.mxu0 0.0
  %805 = vmatpush.msra.mxu0 0.0
  %806 = vmatpush.msra.mxu0 0.0
  %807 = vmatpush.msra.mxu0 0.0
  %808 = vmatpush.msra.mxu0 %v777
  %809 = vmatpush.msra.mxu0 %v776
  %810 = vmatmul.f32.gmra.mxu0 %v789
  %v811 = vpop.f32.mrf.mxu0
  %v812 = vadd.f32 %v782, %v811
  %813 = vmatmul.f32.gmra.mxu0 %v792
  %v814 = vpop.f32.mrf.mxu0
  %v815 = vadd.f32 %v786, %v814
  %816 = vdwg.mxu0
  %v817 = vmul.f32 %v812, 0.5
  %v818 = vmul.f32 %v815, 0.5
  %v819 = vtanh.pop %v817
  %v820 = vtanh.pop %v818
  %v821 = vmul.f32 %v819, 0.5
  %v822 = vmul.f32 %v820, 0.5
  %v823 = vadd.f32 %v821, 0.5
  %v824 = vadd.f32 %v822, 0.5
  %v825 = vadd.f32 %v823, 1.0
  %v826 = vadd.f32 %v824, 1.0
  %828 = vset.pattern.permute.xlu0 0
  %829 = vperm.xlu0 %828, %v825
  %v830 = vpop.permute.xlu0 %829
  %833 = vset.pattern.permute.xlu0 0
  %834 = vperm.xlu0 %833, %v826
  %v835 = vpop.permute.xlu0 %834
  %v837 = vmul.f32 %v702, %v830
  %v838 = vmul.f32 %v703, %v830
  %v839 = vmul.f32 %v704, %v835
  %v840 = vmul.f32 %v705, %v835
  %841 = vst [vmem:[%s5] sm:$0xff] %v837
  %842 = vst [vmem:[%s5 + $0x8] sm:$0xff] %v838
  %843 = vst [vmem:[%s5 + $0x10] sm:$0xff] %v839
  %844 = vst [vmem:[%s5 + $0x18] sm:$0xff] %v840
  %845 = vset.pattern.permute.xlu0 1
  %846 = vperm.xlu0 %845, %v825
  %v847 = vpop.permute.xlu0 %846
  %849 = vset.pattern.permute.xlu0 1
  %850 = vperm.xlu0 %849, %v826
  %v851 = vpop.permute.xlu0 %850
  %v853 = vmul.f32 %v722, %v847
  %v854 = vmul.f32 %v723, %v847
  %v855 = vmul.f32 %v724, %v851
  %v856 = vmul.f32 %v725, %v851
  %s857 = scalar_lea.vmem %s5, 32
  %858 = vst [vmem:[%s857] sm:$0xff] %v853
  %859 = vst [vmem:[%s857 + $0x8] sm:$0xff] %v854
  %860 = vst [vmem:[%s857 + $0x10] sm:$0xff] %v855
  %861 = vst [vmem:[%s857 + $0x18] sm:$0xff] %v856
  // Predicated region
  $region22: #{dfwe_forward.1} parent=0 // pred_check
    _
  $region23: #{dfwe_forward.1} parent=0 // pred_check_branch
    %863 = sbr.rel (0) target = $region25
  $region24: #{dfwe_forward.1} parent=0 // pred_region
    _
  $region25: #{dfwe_forward.1} parent=0 // pred_fallthru
    _
  // Predicated region
  $region26: #{dfwe_forward.1} parent=0 // pred_check
    _
  $region27: #{dfwe_forward.1} parent=0 // pred_check_branch
    %865 = sbr.rel (0) target = $region29
  $region28: #{dfwe_forward.1} parent=0 // pred_region
    _
  $region29: #{dfwe_forward.1} parent=0 // pred_fallthru
    _

</llo_original>
